<compile_context>
chip_gen: v7x
topology: tpu7x:2x2x1
jax: 0.10.0
libtpu: 0.0.40
codegen_flags: <defaults>
</compile_context>

<pallas_src>
import functools

import jax
import jax.numpy as jnp
from jax.experimental import pallas as pl
from jax.experimental.pallas import tpu as pltpu


def _gather_vmem_kernel(idx_ref, emb_ref, out_ref, *, block_n):
    """Table resident in VMEM: dynamic-row vector loads into the output block."""
    base = pl.program_id(0) * block_n
    for j in range(block_n):
        row = idx_ref[base + j]          # scalar read from SMEM
        out_ref[j, :] = emb_ref[row, :]  # dynamic sublane-indexed vector load


def _gather_hbm_kernel(idx_ref, emb_ref, out_ref, sem_ref, *, block_n):
    """Table in HBM: per-row DMAs straight into the pipelined output block."""
    base = pl.program_id(0) * block_n

    # Issue every row DMA first (they run concurrently); all SMEM index reads
    # happen here, before any wait.
    copies = []
    for j in range(block_n):
        row = idx_ref[base + j]
        cp = pltpu.make_async_copy(
            emb_ref.at[pl.ds(row, 1), :],
            out_ref.at[pl.ds(j, 1), :],
            sem_ref.at[j],
        )
        cp.start()
        copies.append(cp)

    # Wait for every row to land (writes to out_ref complete before the
    # pipelined output writeback of this block).
    for cp in copies:
        cp.wait()


def sparse_embedding_lookup(
    embedding,
    indices,
    *,
    block_n=16,
    vmem_table_limit_bytes=8 * 1024 * 1024,
):
    """Pallas TPU equivalent of `embedding[indices, :]` (dense SparseEmbedding path).

    embedding: (V, D) table.
    indices:   integer array of any shape; output has shape indices.shape + (D,).
    """
    embedding = jnp.asarray(embedding)
    V, D = embedding.shape
    orig_shape = indices.shape

    flat = indices.reshape(-1).astype(jnp.int32)
    n = flat.shape[0]
    n_pad = ((n + block_n - 1) // block_n) * block_n
    if n_pad != n:
        # Pad with index 0 (always valid); padded rows are sliced off below.
        flat = jnp.concatenate([flat, jnp.zeros((n_pad - n,), jnp.int32)])

    grid = (n_pad // block_n,)
    table_bytes = V * D * embedding.dtype.itemsize

    if table_bytes <= vmem_table_limit_bytes:
        # Fast path: table resident in VMEM, pure vector gathers.
        kernel = functools.partial(_gather_vmem_kernel, block_n=block_n)
        out = pl.pallas_call(
            kernel,
            out_shape=jax.ShapeDtypeStruct((n_pad, D), embedding.dtype),
            grid_spec=pltpu.PrefetchScalarGridSpec(
                num_scalar_prefetch=1,                       # flat indices -> SMEM
                grid=grid,
                in_specs=[
                    # Constant block index -> table DMA'd once, stays resident.
                    pl.BlockSpec((V, D), lambda i, idx: (0, 0)),
                ],
                out_specs=pl.BlockSpec((block_n, D), lambda i, idx: (i, 0)),
            ),
            compiler_params=pltpu.CompilerParams(
                dimension_semantics=("parallel",),
            ),
        )(flat, embedding)
    else:
        # General path: arbitrary vocab size, table stays in HBM.
        kernel = functools.partial(_gather_hbm_kernel, block_n=block_n)
        out = pl.pallas_call(
            kernel,
            out_shape=jax.ShapeDtypeStruct((n_pad, D), embedding.dtype),
            grid_spec=pltpu.PrefetchScalarGridSpec(
                num_scalar_prefetch=1,                       # flat indices -> SMEM
                grid=grid,
                in_specs=[
                    pl.BlockSpec(memory_space=pl.ANY),        # table stays in HBM
                ],
                out_specs=pl.BlockSpec((block_n, D), lambda i, idx: (i, 0)),
                scratch_shapes=[
                    pltpu.SemaphoreType.DMA((block_n,)),      # one sem per row DMA
                ],
            ),
            compiler_params=pltpu.CompilerParams(
                dimension_semantics=("parallel",),
            ),
        )(flat, embedding)

    out = out[:n]
    return out.reshape(orig_shape + (D,))


class SparseEmbedding:
    """Minimal JAX counterpart of the PyTorch SparseEmbedding module (dense path)."""

    def __init__(self, embedding_weight, sparse=False):
        # TODO(synk): the scipy-sparse (`sparse=True`) branch does host-side
        # .todense() gathers and has no Pallas equivalent; only the dense-table
        # lookup is implemented here.
        self.embedding = jnp.asarray(embedding_weight)

    def forward(self, x):
        return sparse_embedding_lookup(self.embedding, x)

    __call__ = forward


if __name__ == "__main__":
    key = jax.random.PRNGKey(0)
    V, D = 64, 128          # lane-dense embedding dim (multiple of 128)
    B, L = 2, 8             # small index batch

    k_emb, k_idx, k_idx2 = jax.random.split(key, 3)
    emb = jax.random.normal(k_emb, (V, D), dtype=jnp.float32)
    idx = jax.random.randint(k_idx, (B, L), 0, V, dtype=jnp.int32)

    module = SparseEmbedding(emb)

    # 1) Default (VMEM-resident table) path.
    out = module(idx)
    jax.block_until_ready(out)
    ref = emb[idx]  # pure-JAX reference: embedding[x, :]
    assert out.shape == (B, L, D), f"bad shape {out.shape}"
    assert jnp.array_equal(out, ref), "embedding lookup mismatch (VMEM path)"

    # 2) Size not a multiple of the block (exercises padding).
    idx2 = jax.random.randint(k_idx2, (3, 5), 0, V, dtype=jnp.int32)
    out2 = module(idx2)
    jax.block_until_ready(out2)
    assert jnp.array_equal(out2, emb[idx2]), "padded lookup mismatch"

    # 3) Force the HBM-DMA path (used for large vocabularies).
    out3 = sparse_embedding_lookup(emb, idx, vmem_table_limit_bytes=0)
    jax.block_until_ready(out3)
    assert jnp.array_equal(out3, ref), "embedding lookup mismatch (HBM path)"

    print("KERNEL_OK")
</pallas_src>

<mosaic_0001>
module attributes {stable_mosaic.version = 11 : i64} {
  func.func @_gather_vmem_kernel(%arg0: i32, %arg1: memref<16xi32, #tpu.memory_space<smem>>, %arg2: memref<64x128xf32, #tpu.memory_space<vmem>>, %arg3: memref<16x128xf32, #tpu.memory_space<vmem>>) attributes {dimension_semantics = [#tpu.dimension_semantics<parallel>], iteration_bounds = array<i64: 1>, scalar_prefetch = 1 : i64, scratch_operands = 0 : i64, tpu.core_type = #tpu.core_type<tc>, window_params = [{pipeline_mode = #tpu.pipeline_mode<synchronous>, transform_indices = @transform_0, window_bounds = array<i64: 64, 128>}, {transform_indices = @transform_1, window_bounds = array<i64: 16, 128>}]} {
    %c16_i32 = arith.constant 16 : i32
    %0 = arith.muli %arg0, %c16_i32 : i32
    %c0_i32 = arith.constant 0 : i32
    %1 = arith.addi %0, %c0_i32 : i32
    %2 = arith.index_cast %1 : i32 to index
    %3 = memref.load %arg1[%2] : memref<16xi32, #tpu.memory_space<smem>>
    %4 = arith.index_cast %3 : i32 to index
    %c0 = arith.constant 0 : index
    %5 = vector.load %arg2[%4, %c0] : memref<64x128xf32, #tpu.memory_space<vmem>>, vector<1x128xf32>
    %6 = vector.shape_cast %5 : vector<1x128xf32> to vector<128xf32>
    %c0_0 = arith.constant 0 : index
    %c0_1 = arith.constant 0 : index
    %7 = vector.load %arg3[%c0_0, %c0_1] : memref<16x128xf32, #tpu.memory_space<vmem>>, vector<1x128xf32>
    %8 = vector.shape_cast %7 : vector<1x128xf32> to vector<128xf32>
    %9 = vector.shape_cast %6 : vector<128xf32> to vector<1x128xf32>
    tpu.vector_store %arg3[%c0_0, %c0_1], %9 {strides = array<i32>} : memref<16x128xf32, #tpu.memory_space<vmem>>, vector<1x128xf32>,
    %c1_i32 = arith.constant 1 : i32
    %10 = arith.addi %0, %c1_i32 : i32
    %11 = arith.index_cast %10 : i32 to index
    %12 = memref.load %arg1[%11] : memref<16xi32, #tpu.memory_space<smem>>
    %13 = arith.index_cast %12 : i32 to index
    %c0_2 = arith.constant 0 : index
    %14 = vector.load %arg2[%13, %c0_2] : memref<64x128xf32, #tpu.memory_space<vmem>>, vector<1x128xf32>
    %15 = vector.shape_cast %14 : vector<1x128xf32> to vector<128xf32>
    %c1 = arith.constant 1 : index
    %c0_3 = arith.constant 0 : index
    %16 = vector.load %arg3[%c1, %c0_3] : memref<16x128xf32, #tpu.memory_space<vmem>>, vector<1x128xf32>
    %17 = vector.shape_cast %16 : vector<1x128xf32> to vector<128xf32>
    %18 = vector.shape_cast %15 : vector<128xf32> to vector<1x128xf32>
    tpu.vector_store %arg3[%c1, %c0_3], %18 {strides = array<i32>} : memref<16x128xf32, #tpu.memory_space<vmem>>, vector<1x128xf32>,
    %c2_i32 = arith.constant 2 : i32
    %19 = arith.addi %0, %c2_i32 : i32
    %20 = arith.index_cast %19 : i32 to index
    %21 = memref.load %arg1[%20] : memref<16xi32, #tpu.memory_space<smem>>
    %22 = arith.index_cast %21 : i32 to index
    %c0_4 = arith.constant 0 : index
    %23 = vector.load %arg2[%22, %c0_4] : memref<64x128xf32, #tpu.memory_space<vmem>>, vector<1x128xf32>
    %24 = vector.shape_cast %23 : vector<1x128xf32> to vector<128xf32>
    %c2 = arith.constant 2 : index
    %c0_5 = arith.constant 0 : index
    %25 = vector.load %arg3[%c2, %c0_5] : memref<16x128xf32, #tpu.memory_space<vmem>>, vector<1x128xf32>
    %26 = vector.shape_cast %25 : vector<1x128xf32> to vector<128xf32>
    %27 = vector.shape_cast %24 : vector<128xf32> to vector<1x128xf32>
    tpu.vector_store %arg3[%c2, %c0_5], %27 {strides = array<i32>} : memref<16x128xf32, #tpu.memory_space<vmem>>, vector<1x128xf32>,
    %c3_i32 = arith.constant 3 : i32
    %28 = arith.addi %0, %c3_i32 : i32
    %29 = arith.index_cast %28 : i32 to index
    %30 = memref.load %arg1[%29] : memref<16xi32, #tpu.memory_space<smem>>
    %31 = arith.index_cast %30 : i32 to index
    %c0_6 = arith.constant 0 : index
    %32 = vector.load %arg2[%31, %c0_6] : memref<64x128xf32, #tpu.memory_space<vmem>>, vector<1x128xf32>
    %33 = vector.shape_cast %32 : vector<1x128xf32> to vector<128xf32>
    %c3 = arith.constant 3 : index
    %c0_7 = arith.constant 0 : index
    %34 = vector.load %arg3[%c3, %c0_7] : memref<16x128xf32, #tpu.memory_space<vmem>>, vector<1x128xf32>
    %35 = vector.shape_cast %34 : vector<1x128xf32> to vector<128xf32>
    %36 = vector.shape_cast %33 : vector<128xf32> to vector<1x128xf32>
    tpu.vector_store %arg3[%c3, %c0_7], %36 {strides = array<i32>} : memref<16x128xf32, #tpu.memory_space<vmem>>, vector<1x128xf32>,
    %c4_i32 = arith.constant 4 : i32
    %37 = arith.addi %0, %c4_i32 : i32
    %38 = arith.index_cast %37 : i32 to index
    %39 = memref.load %arg1[%38] : memref<16xi32, #tpu.memory_space<smem>>
    %40 = arith.index_cast %39 : i32 to index
    %c0_8 = arith.constant 0 : index
    %41 = vector.load %arg2[%40, %c0_8] : memref<64x128xf32, #tpu.memory_space<vmem>>, vector<1x128xf32>
    %42 = vector.shape_cast %41 : vector<1x128xf32> to vector<128xf32>
    %c4 = arith.constant 4 : index
    %c0_9 = arith.constant 0 : index
    %43 = vector.load %arg3[%c4, %c0_9] : memref<16x128xf32, #tpu.memory_space<vmem>>, vector<1x128xf32>
    %44 = vector.shape_cast %43 : vector<1x128xf32> to vector<128xf32>
    %45 = vector.shape_cast %42 : vector<128xf32> to vector<1x128xf32>
    tpu.vector_store %arg3[%c4, %c0_9], %45 {strides = array<i32>} : memref<16x128xf32, #tpu.memory_space<vmem>>, vector<1x128xf32>,
    %c5_i32 = arith.constant 5 : i32
    %46 = arith.addi %0, %c5_i32 : i32
    %47 = arith.index_cast %46 : i32 to index
    %48 = memref.load %arg1[%47] : memref<16xi32, #tpu.memory_space<smem>>
    %49 = arith.index_cast %48 : i32 to index
    %c0_10 = arith.constant 0 : index
    %50 = vector.load %arg2[%49, %c0_10] : memref<64x128xf32, #tpu.memory_space<vmem>>, vector<1x128xf32>
    %51 = vector.shape_cast %50 : vector<1x128xf32> to vector<128xf32>
    %c5 = arith.constant 5 : index
    %c0_11 = arith.constant 0 : index
    %52 = vector.load %arg3[%c5, %c0_11] : memref<16x128xf32, #tpu.memory_space<vmem>>, vector<1x128xf32>
    %53 = vector.shape_cast %52 : vector<1x128xf32> to vector<128xf32>
    %54 = vector.shape_cast %51 : vector<128xf32> to vector<1x128xf32>
    tpu.vector_store %arg3[%c5, %c0_11], %54 {strides = array<i32>} : memref<16x128xf32, #tpu.memory_space<vmem>>, vector<1x128xf32>,
    %c6_i32 = arith.constant 6 : i32
    %55 = arith.addi %0, %c6_i32 : i32
    %56 = arith.index_cast %55 : i32 to index
    %57 = memref.load %arg1[%56] : memref<16xi32, #tpu.memory_space<smem>>
    %58 = arith.index_cast %57 : i32 to index
    %c0_12 = arith.constant 0 : index
    %59 = vector.load %arg2[%58, %c0_12] : memref<64x128xf32, #tpu.memory_space<vmem>>, vector<1x128xf32>
    %60 = vector.shape_cast %59 : vector<1x128xf32> to vector<128xf32>
    %c6 = arith.constant 6 : index
    %c0_13 = arith.constant 0 : index
    %61 = vector.load %arg3[%c6, %c0_13] : memref<16x128xf32, #tpu.memory_space<vmem>>, vector<1x128xf32>
    %62 = vector.shape_cast %61 : vector<1x128xf32> to vector<128xf32>
    %63 = vector.shape_cast %60 : vector<128xf32> to vector<1x128xf32>
    tpu.vector_store %arg3[%c6, %c0_13], %63 {strides = array<i32>} : memref<16x128xf32, #tpu.memory_space<vmem>>, vector<1x128xf32>,
    %c7_i32 = arith.constant 7 : i32
    %64 = arith.addi %0, %c7_i32 : i32
    %65 = arith.index_cast %64 : i32 to index
    %66 = memref.load %arg1[%65] : memref<16xi32, #tpu.memory_space<smem>>
    %67 = arith.index_cast %66 : i32 to index
    %c0_14 = arith.constant 0 : index
    %68 = vector.load %arg2[%67, %c0_14] : memref<64x128xf32, #tpu.memory_space<vmem>>, vector<1x128xf32>
    %69 = vector.shape_cast %68 : vector<1x128xf32> to vector<128xf32>
    %c7 = arith.constant 7 : index
    %c0_15 = arith.constant 0 : index
    %70 = vector.load %arg3[%c7, %c0_15] : memref<16x128xf32, #tpu.memory_space<vmem>>, vector<1x128xf32>
    %71 = vector.shape_cast %70 : vector<1x128xf32> to vector<128xf32>
    %72 = vector.shape_cast %69 : vector<128xf32> to vector<1x128xf32>
    tpu.vector_store %arg3[%c7, %c0_15], %72 {strides = array<i32>} : memref<16x128xf32, #tpu.memory_space<vmem>>, vector<1x128xf32>,
    %c8_i32 = arith.constant 8 : i32
    %73 = arith.addi %0, %c8_i32 : i32
    %74 = arith.index_cast %73 : i32 to index
    %75 = memref.load %arg1[%74] : memref<16xi32, #tpu.memory_space<smem>>
    %76 = arith.index_cast %75 : i32 to index
    %c0_16 = arith.constant 0 : index
    %77 = vector.load %arg2[%76, %c0_16] : memref<64x128xf32, #tpu.memory_space<vmem>>, vector<1x128xf32>
    %78 = vector.shape_cast %77 : vector<1x128xf32> to vector<128xf32>
    %c8 = arith.constant 8 : index
    %c0_17 = arith.constant 0 : index
    %79 = vector.load %arg3[%c8, %c0_17] : memref<16x128xf32, #tpu.memory_space<vmem>>, vector<1x128xf32>
    %80 = vector.shape_cast %79 : vector<1x128xf32> to vector<128xf32>
    %81 = vector.shape_cast %78 : vector<128xf32> to vector<1x128xf32>
    tpu.vector_store %arg3[%c8, %c0_17], %81 {strides = array<i32>} : memref<16x128xf32, #tpu.memory_space<vmem>>, vector<1x128xf32>,
    %c9_i32 = arith.constant 9 : i32
    %82 = arith.addi %0, %c9_i32 : i32
    %83 = arith.index_cast %82 : i32 to index
    %84 = memref.load %arg1[%83] : memref<16xi32, #tpu.memory_space<smem>>
    %85 = arith.index_cast %84 : i32 to index
    %c0_18 = arith.constant 0 : index
    %86 = vector.load %arg2[%85, %c0_18] : memref<64x128xf32, #tpu.memory_space<vmem>>, vector<1x128xf32>
    %87 = vector.shape_cast %86 : vector<1x128xf32> to vector<128xf32>
    %c9 = arith.constant 9 : index
    %c0_19 = arith.constant 0 : index
    %88 = vector.load %arg3[%c9, %c0_19] : memref<16x128xf32, #tpu.memory_space<vmem>>, vector<1x128xf32>
    %89 = vector.shape_cast %88 : vector<1x128xf32> to vector<128xf32>
    %90 = vector.shape_cast %87 : vector<128xf32> to vector<1x128xf32>
    tpu.vector_store %arg3[%c9, %c0_19], %90 {strides = array<i32>} : memref<16x128xf32, #tpu.memory_space<vmem>>, vector<1x128xf32>,
    %c10_i32 = arith.constant 10 : i32
    %91 = arith.addi %0, %c10_i32 : i32
    %92 = arith.index_cast %91 : i32 to index
    %93 = memref.load %arg1[%92] : memref<16xi32, #tpu.memory_space<smem>>
    %94 = arith.index_cast %93 : i32 to index
    %c0_20 = arith.constant 0 : index
    %95 = vector.load %arg2[%94, %c0_20] : memref<64x128xf32, #tpu.memory_space<vmem>>, vector<1x128xf32>
    %96 = vector.shape_cast %95 : vector<1x128xf32> to vector<128xf32>
    %c10 = arith.constant 10 : index
    %c0_21 = arith.constant 0 : index
    %97 = vector.load %arg3[%c10, %c0_21] : memref<16x128xf32, #tpu.memory_space<vmem>>, vector<1x128xf32>
    %98 = vector.shape_cast %97 : vector<1x128xf32> to vector<128xf32>
    %99 = vector.shape_cast %96 : vector<128xf32> to vector<1x128xf32>
    tpu.vector_store %arg3[%c10, %c0_21], %99 {strides = array<i32>} : memref<16x128xf32, #tpu.memory_space<vmem>>, vector<1x128xf32>,
    %c11_i32 = arith.constant 11 : i32
    %100 = arith.addi %0, %c11_i32 : i32
    %101 = arith.index_cast %100 : i32 to index
    %102 = memref.load %arg1[%101] : memref<16xi32, #tpu.memory_space<smem>>
    %103 = arith.index_cast %102 : i32 to index
    %c0_22 = arith.constant 0 : index
    %104 = vector.load %arg2[%103, %c0_22] : memref<64x128xf32, #tpu.memory_space<vmem>>, vector<1x128xf32>
    %105 = vector.shape_cast %104 : vector<1x128xf32> to vector<128xf32>
    %c11 = arith.constant 11 : index
    %c0_23 = arith.constant 0 : index
    %106 = vector.load %arg3[%c11, %c0_23] : memref<16x128xf32, #tpu.memory_space<vmem>>, vector<1x128xf32>
    %107 = vector.shape_cast %106 : vector<1x128xf32> to vector<128xf32>
    %108 = vector.shape_cast %105 : vector<128xf32> to vector<1x128xf32>
    tpu.vector_store %arg3[%c11, %c0_23], %108 {strides = array<i32>} : memref<16x128xf32, #tpu.memory_space<vmem>>, vector<1x128xf32>,
    %c12_i32 = arith.constant 12 : i32
    %109 = arith.addi %0, %c12_i32 : i32
    %110 = arith.index_cast %109 : i32 to index
    %111 = memref.load %arg1[%110] : memref<16xi32, #tpu.memory_space<smem>>
    %112 = arith.index_cast %111 : i32 to index
    %c0_24 = arith.constant 0 : index
    %113 = vector.load %arg2[%112, %c0_24] : memref<64x128xf32, #tpu.memory_space<vmem>>, vector<1x128xf32>
    %114 = vector.shape_cast %113 : vector<1x128xf32> to vector<128xf32>
    %c12 = arith.constant 12 : index
    %c0_25 = arith.constant 0 : index
    %115 = vector.load %arg3[%c12, %c0_25] : memref<16x128xf32, #tpu.memory_space<vmem>>, vector<1x128xf32>
    %116 = vector.shape_cast %115 : vector<1x128xf32> to vector<128xf32>
    %117 = vector.shape_cast %114 : vector<128xf32> to vector<1x128xf32>
    tpu.vector_store %arg3[%c12, %c0_25], %117 {strides = array<i32>} : memref<16x128xf32, #tpu.memory_space<vmem>>, vector<1x128xf32>,
    %c13_i32 = arith.constant 13 : i32
    %118 = arith.addi %0, %c13_i32 : i32
    %119 = arith.index_cast %118 : i32 to index
    %120 = memref.load %arg1[%119] : memref<16xi32, #tpu.memory_space<smem>>
    %121 = arith.index_cast %120 : i32 to index
    %c0_26 = arith.constant 0 : index
    %122 = vector.load %arg2[%121, %c0_26] : memref<64x128xf32, #tpu.memory_space<vmem>>, vector<1x128xf32>
    %123 = vector.shape_cast %122 : vector<1x128xf32> to vector<128xf32>
    %c13 = arith.constant 13 : index
    %c0_27 = arith.constant 0 : index
    %124 = vector.load %arg3[%c13, %c0_27] : memref<16x128xf32, #tpu.memory_space<vmem>>, vector<1x128xf32>
    %125 = vector.shape_cast %124 : vector<1x128xf32> to vector<128xf32>
    %126 = vector.shape_cast %123 : vector<128xf32> to vector<1x128xf32>
    tpu.vector_store %arg3[%c13, %c0_27], %126 {strides = array<i32>} : memref<16x128xf32, #tpu.memory_space<vmem>>, vector<1x128xf32>,
    %c14_i32 = arith.constant 14 : i32
    %127 = arith.addi %0, %c14_i32 : i32
    %128 = arith.index_cast %127 : i32 to index
    %129 = memref.load %arg1[%128] : memref<16xi32, #tpu.memory_space<smem>>
    %130 = arith.index_cast %129 : i32 to index
    %c0_28 = arith.constant 0 : index
    %131 = vector.load %arg2[%130, %c0_28] : memref<64x128xf32, #tpu.memory_space<vmem>>, vector<1x128xf32>
    %132 = vector.shape_cast %131 : vector<1x128xf32> to vector<128xf32>
    %c14 = arith.constant 14 : index
    %c0_29 = arith.constant 0 : index
    %133 = vector.load %arg3[%c14, %c0_29] : memref<16x128xf32, #tpu.memory_space<vmem>>, vector<1x128xf32>
    %134 = vector.shape_cast %133 : vector<1x128xf32> to vector<128xf32>
    %135 = vector.shape_cast %132 : vector<128xf32> to vector<1x128xf32>
    tpu.vector_store %arg3[%c14, %c0_29], %135 {strides = array<i32>} : memref<16x128xf32, #tpu.memory_space<vmem>>, vector<1x128xf32>,
    %c15_i32 = arith.constant 15 : i32
    %136 = arith.addi %0, %c15_i32 : i32
    %137 = arith.index_cast %136 : i32 to index
    %138 = memref.load %arg1[%137] : memref<16xi32, #tpu.memory_space<smem>>
    %139 = arith.index_cast %138 : i32 to index
    %c0_30 = arith.constant 0 : index
    %140 = vector.load %arg2[%139, %c0_30] : memref<64x128xf32, #tpu.memory_space<vmem>>, vector<1x128xf32>
    %141 = vector.shape_cast %140 : vector<1x128xf32> to vector<128xf32>
    %c15 = arith.constant 15 : index
    %c0_31 = arith.constant 0 : index
    %142 = vector.load %arg3[%c15, %c0_31] : memref<16x128xf32, #tpu.memory_space<vmem>>, vector<1x128xf32>
    %143 = vector.shape_cast %142 : vector<1x128xf32> to vector<128xf32>
    %144 = vector.shape_cast %141 : vector<128xf32> to vector<1x128xf32>
    tpu.vector_store %arg3[%c15, %c0_31], %144 {strides = array<i32>} : memref<16x128xf32, #tpu.memory_space<vmem>>, vector<1x128xf32>,
    return
  }
  func.func @transform_0(%arg0: i32, %arg1: memref<16xi32, #tpu.memory_space<smem>>) -> (i32, i32) {
    %c0_i32 = arith.constant 0 : i32
    %c0_i32_0 = arith.constant 0 : i32
    %c0_i32_1 = arith.constant 0 : i32
    return %c0_i32, %c0_i32_0 : i32, i32
  }
  func.func @transform_1(%arg0: i32, %arg1: memref<16xi32, #tpu.memory_space<smem>>) -> (i32, i32) {
    %c0_i32 = arith.constant 0 : i32
    %c0_i32_0 = arith.constant 0 : i32
    return %arg0, %c0_i32 : i32, i32
  }
}

</mosaic_0001>

<llo_original>
// kernel: tpu_custom_call.1
$region0: #{tpu_custom_call.1}
  #allocation0 [shape = 'u32[]', space=smem, size = 0x4, offset = 0x4, fixed_abs, tag = 'smem constant byte address 0x4 - core index']
  #allocation1 [shape = 'u32[144,128]{1,0:T(1,128)}', space=vmem, size = 0x12000, scoped, tag = 'internal scratch']
  #allocation2 [shape = 's32[1]{0}', space=sflag, size = 0x4, scoped, tag = 'scoped memory for tpu_custom_call.1']
  #allocation3 [shape = 'u8[512]{0}', space=smem, size = 0x200, scoped, tag = 'prefetched SMEM operand 0']
  %s0 = inlined_call_operand.hbm [shape: s32[16], index: 0, kind: input, shape index: {}]
  %s1 = inlined_call_operand.hbm [shape: f32[64,128], index: 1, kind: input, shape index: {}]
  %s2 = inlined_call_operand.hbm [shape: f32[16,128], index: 2, kind: output, shape index: {}]
  %s3 = sld [smem:[#allocation0]]
  $region18: #{tpu_custom_call.1} parent=0
    _
  %s5 = ssub.s32 1, %s3
  %s6 = scalar_select 0, %s5, %s3
  %8 = dma.hbm_to_smem %s0, 16, [#allocation3], [#allocation2]
  %9 = dma.done [#allocation2], 16
  %10 = sfence
  $region1: #{tpu_custom_call.1} parent=0
    #allocation4 [shape = 'u8[32768]{0}', space=vmem, size = 0x8000, scoped, tag = 'input window, operand 1, single buffered']
    #allocation5 [shape = 's32[1]{0}', space=sflag, size = 0x4, scoped, tag = 'scoped memory for tpu_custom_call.1']
    #allocation6 [shape = 's32[1]{0}', space=sflag, size = 0x4, scoped, tag = 'scoped memory for tpu_custom_call.1']
    #allocation7 [shape = 'u8[8192]{0}', space=vmem, size = 0x2000, scoped, tag = 'output window, operand 0, single buffered']
    %11 = vsyncpa [#allocation5], 0
    %12 = vsyncpa [#allocation6], 0
    // Predicated region
    $region2: #{tpu_custom_call.1} parent=1 // pred_check
      _
    $region3: #{tpu_custom_call.1} parent=1 // pred_check_branch
      %14 = sbr.rel (0) target = $region5
    $region4: #{tpu_custom_call.1} parent=1 // pred_region
      %s16 = ssub.s32 1024, 1024
      %17 = vsyncadd [#allocation5], %s16
      %s18 = sshll.u32 [#allocation4], 4
      %s19 = int_to_ptr.vmem [resolvable:$true] %s18
      %24 = dma.hbm_to_vmem [thread:$0]  %s1, 1024, %s19, [#allocation5], 128, 128, 8
    $region5: #{tpu_custom_call.1} parent=1 // pred_fallthru
      _
    // Predicated region
    $region6: #{tpu_custom_call.1} parent=1 // pred_check
      _
    $region7: #{tpu_custom_call.1} parent=1 // pred_check_branch
      %26 = sbr.rel (0) target = $region9
    $region8: #{tpu_custom_call.1} parent=1 // pred_region
      %27 = dma.done [#allocation5], 1024
    $region9: #{tpu_custom_call.1} parent=1 // pred_fallthru
      _
    %s28 = smul.u32 0, 16
    %s29 = sld [smem:[#allocation3 + %s28]]
    %s30 = scalar_lea.vmem [#allocation4], %s29
    %v31 = vld [vmem:[%s30] sm:$0x1]
    %32 = vst [vmem:[#allocation7] sm:$0x1] %v31
    %s33 = sadd.s32 %s28, 1
    %s34 = sld [smem:[#allocation3 + %s33]]
    %s35 = scalar_lea.vmem [#allocation4], %s34
    %v36 = vld [vmem:[%s35] sm:$0x1]
    %37 = vst [vmem:[#allocation7 + $0x1] sm:$0x1] %v36
    %s38 = sadd.s32 %s28, 2
    %s39 = sld [smem:[#allocation3 + %s38]]
    %s40 = scalar_lea.vmem [#allocation4], %s39
    %v41 = vld [vmem:[%s40] sm:$0x1]
    %42 = vst [vmem:[#allocation7 + $0x2] sm:$0x1] %v41
    %s43 = sadd.s32 %s28, 3
    %s44 = sld [smem:[#allocation3 + %s43]]
    %s45 = scalar_lea.vmem [#allocation4], %s44
    %v46 = vld [vmem:[%s45] sm:$0x1]
    %47 = vst [vmem:[#allocation7 + $0x3] sm:$0x1] %v46
    %s48 = sadd.s32 %s28, 4
    %s49 = sld [smem:[#allocation3 + %s48]]
    %s50 = scalar_lea.vmem [#allocation4], %s49
    %v51 = vld [vmem:[%s50] sm:$0x1]
    %52 = vst [vmem:[#allocation7 + $0x4] sm:$0x1] %v51
    %s53 = sadd.s32 %s28, 5
    %s54 = sld [smem:[#allocation3 + %s53]]
    %s55 = scalar_lea.vmem [#allocation4], %s54
    %v56 = vld [vmem:[%s55] sm:$0x1]
    %57 = vst [vmem:[#allocation7 + $0x5] sm:$0x1] %v56
    %s58 = sadd.s32 %s28, 6
    %s59 = sld [smem:[#allocation3 + %s58]]
    %s60 = scalar_lea.vmem [#allocation4], %s59
    %v61 = vld [vmem:[%s60] sm:$0x1]
    %62 = vst [vmem:[#allocation7 + $0x6] sm:$0x1] %v61
    %s63 = sadd.s32 %s28, 7
    %s64 = sld [smem:[#allocation3 + %s63]]
    %s65 = scalar_lea.vmem [#allocation4], %s64
    %v66 = vld [vmem:[%s65] sm:$0x1]
    %67 = vst [vmem:[#allocation7 + $0x7] sm:$0x1] %v66
    %s68 = sadd.s32 %s28, 8
    %s69 = sld [smem:[#allocation3 + %s68]]
    %s70 = scalar_lea.vmem [#allocation4], %s69
    %v71 = vld [vmem:[%s70] sm:$0x1]
    %72 = vst [vmem:[#allocation7 + $0x8] sm:$0x1] %v71
    %s73 = sadd.s32 %s28, 9
    %s74 = sld [smem:[#allocation3 + %s73]]
    %s75 = scalar_lea.vmem [#allocation4], %s74
    %v76 = vld [vmem:[%s75] sm:$0x1]
    %77 = vst [vmem:[#allocation7 + $0x9] sm:$0x1] %v76
    %s78 = sadd.s32 %s28, 10
    %s79 = sld [smem:[#allocation3 + %s78]]
    %s80 = scalar_lea.vmem [#allocation4], %s79
    %v81 = vld [vmem:[%s80] sm:$0x1]
    %82 = vst [vmem:[#allocation7 + $0xa] sm:$0x1] %v81
    %s83 = sadd.s32 %s28, 11
    %s84 = sld [smem:[#allocation3 + %s83]]
    %s85 = scalar_lea.vmem [#allocation4], %s84
    %v86 = vld [vmem:[%s85] sm:$0x1]
    %87 = vst [vmem:[#allocation7 + $0xb] sm:$0x1] %v86
    %s88 = sadd.s32 %s28, 12
    %s89 = sld [smem:[#allocation3 + %s88]]
    %s90 = scalar_lea.vmem [#allocation4], %s89
    %v91 = vld [vmem:[%s90] sm:$0x1]
    %92 = vst [vmem:[#allocation7 + $0xc] sm:$0x1] %v91
    %s93 = sadd.s32 %s28, 13
    %s94 = sld [smem:[#allocation3 + %s93]]
    %s95 = scalar_lea.vmem [#allocation4], %s94
    %v96 = vld [vmem:[%s95] sm:$0x1]
    %97 = vst [vmem:[#allocation7 + $0xd] sm:$0x1] %v96
    %s98 = sadd.s32 %s28, 14
    %s99 = sld [smem:[#allocation3 + %s98]]
    %s100 = scalar_lea.vmem [#allocation4], %s99
    %v101 = vld [vmem:[%s100] sm:$0x1]
    %102 = vst [vmem:[#allocation7 + $0xe] sm:$0x1] %v101
    %s103 = sadd.s32 %s28, 15
    %s104 = sld [smem:[#allocation3 + %s103]]
    %s105 = scalar_lea.vmem [#allocation4], %s104
    %v106 = vld [vmem:[%s105] sm:$0x1]
    %107 = vst [vmem:[#allocation7 + $0xf] sm:$0x1] %v106
    // Predicated region
    $region10: #{tpu_custom_call.1} parent=1 // pred_check
      _
    $region11: #{tpu_custom_call.1} parent=1 // pred_check_branch
      %109 = sbr.rel (0) target = $region13
    $region12: #{tpu_custom_call.1} parent=1 // pred_region
      %s111 = ssub.s32 256, 256
      %112 = vsyncadd [#allocation6], %s111
      %s113 = sshll.u32 [#allocation7], 4
      %s114 = int_to_ptr.vmem [resolvable:$true] %s113
      %119 = dma.vmem_to_hbm [thread:$0]  %s114, 256, %s2, [#allocation6], 128, 128, 8
    $region13: #{tpu_custom_call.1} parent=1 // pred_fallthru
      _
    // Predicated region
    $region14: #{tpu_custom_call.1} parent=1 // pred_check
      _
    $region15: #{tpu_custom_call.1} parent=1 // pred_check_branch
      %121 = sbr.rel (0) target = $region17
    $region16: #{tpu_custom_call.1} parent=1 // pred_region
      %122 = dma.done [#allocation6], 256
    $region17: #{tpu_custom_call.1} parent=1 // pred_fallthru
      _
    %123 = vsyncpa [#allocation5], 1
    %124 = vsyncpa [#allocation6], 1

</llo_original>
